<compile_context>
chip_gen: v7x
topology: tpu7x:2x2x1
jax: 0.10.0
libtpu: 0.0.40
codegen_flags: <defaults>
</compile_context>

<pallas_src>
import jax
import jax.numpy as jnp
import numpy as np
from jax.experimental import pallas as pl
from jax.experimental.pallas import tpu as pltpu

EPS = 1e-5                            # nn.BatchNorm2d default eps
_VMEM_LIMIT = 32 * 1024 * 1024        # scoped-VMEM budget; safe on v5e/v6e (128 MiB) and v7x (64 MiB)
_STEP_BYTE_TARGET = 2 * 1024 * 1024   # aim for >= ~2 MB of DMA per grid step


def _relu_conv(x_ref, w_ref):
    """ReLU + fused (block-diagonal) 1x1 conv on one (2*C_in, THW) tile.

    Returns y: (C_out, THW) float32, channels already in concat order."""
    a = jnp.maximum(x_ref[...], 0.0)
    k_dim = a.shape[0]
    if k_dim <= 16:
        # Tiny K: unrolled VPU broadcast-FMAs; an MXU matmul at K<=16 is nearly idle.
        w = w_ref[...]
        y = w[:, 0:1] * a[0:1, :]
        for k in range(1, k_dim):
            y = y + w[:, k:k + 1] * a[k:k + 1, :]
    else:
        y = jnp.dot(w_ref[...], a, preferred_element_type=jnp.float32)
    return y


def _stats_kernel(x_ref, w_ref, sum_ref, ssq_ref):
    """Phase 1: per-(batch, channel) sum / sum-of-squares over the hw tiles."""
    @pl.when(pl.program_id(1) == 0)
    def _():
        sum_ref[...] = jnp.zeros_like(sum_ref)
        ssq_ref[...] = jnp.zeros_like(ssq_ref)

    y = _relu_conv(x_ref, w_ref)
    sum_ref[...] += jnp.sum(y, axis=1, keepdims=True)
    ssq_ref[...] += jnp.sum(y * y, axis=1, keepdims=True)


def _normalize_kernel(x_ref, w_ref, scale_ref, shift_ref, o_ref):
    """Phase 2: recompute y (cheap) and apply the folded BN scale/shift."""
    y = _relu_conv(x_ref, w_ref)
    o_ref[...] = y * scale_ref[...] + shift_ref[...]


def _pick_tile(hw, bytes_per_col):
    """Lane-aligned hw tile: big enough to amortize per-step pipeline overhead,
    small enough that double-buffered blocks fit the scoped-VMEM budget."""
    hw_ceil = ((hw + 127) // 128) * 128
    target = _STEP_BYTE_TARGET // max(bytes_per_col, 1)
    vmem_cap = (_VMEM_LIMIT // 3) // max(2 * bytes_per_col, 1)   # ~1/3 budget, 2 bufs
    cols = max(128, min(target, vmem_cap, hw_ceil))
    return (cols // 128) * 128


def factorized_reduce(x_nchw, w1, w2, gamma, beta):
    """x_nchw: (N, C_in, H, W) f32; w1/w2: (C_out//2, C_in, 1, 1); gamma/beta: (C_out,).
    Returns (N, C_out, H//2, W//2) matching training-mode BatchNorm2d."""
    N, C_in, H, W = x_nchw.shape
    C_half = w1.shape[0]
    C_out = 2 * C_half
    Ho, Wo = H // 2, W // 2
    HW = Ho * Wo

    x = x_nchw.astype(jnp.float32)
    # TODO(synk): the stride-2 tap extraction below is still XLA glue; fusing it into
    # the kernel DMA (strided row/col gather from NCHW) would remove one more
    # read+write of the taps.
    x1 = x[:, :, 0:2 * Ho:2, 0:2 * Wo:2].reshape(N, C_in, HW)           # conv1 taps
    x2 = x[:, :, 1:1 + 2 * Ho:2, 1:1 + 2 * Wo:2].reshape(N, C_in, HW)   # conv2 taps
    xs = jnp.concatenate([x1, x2], axis=1)                              # (N, 2*C_in, HW)

    # Fuse the two 1x1 convs + channel concat into one block-diagonal weight.
    w1m = w1.reshape(C_half, C_in).astype(jnp.float32)
    w2m = w2.reshape(C_half, C_in).astype(jnp.float32)
    zero = jnp.zeros((C_half, C_in), jnp.float32)
    w_bd = jnp.concatenate(
        [jnp.concatenate([w1m, zero], axis=1),
         jnp.concatenate([zero, w2m], axis=1)], axis=0)                 # (C_out, 2*C_in)

    bytes_per_col = 4 * (2 * C_in + C_out)        # input + output bytes per hw column
    THW = _pick_tile(HW, bytes_per_col)
    HWp = ((HW + THW - 1) // THW) * THW
    if HWp != HW:
        # Zero padding is stats-neutral: ReLU(0)=0 and the conv of zeros is 0.
        xs = jnp.pad(xs, ((0, 0), (0, 0), (0, HWp - HW)))
    num_tiles = HWp // THW

    x_spec = pl.BlockSpec((None, 2 * C_in, THW), lambda n, j: (n, 0, j))
    w_spec = pl.BlockSpec((C_out, 2 * C_in), lambda n, j: (0, 0))
    cvec_in_spec = pl.BlockSpec((C_out, 1), lambda n, j: (0, 0))
    cvec_out_spec = pl.BlockSpec((None, C_out, 1), lambda n, j: (n, 0, 0))

    # ---- phase 1: per-(n, channel) sum / sum-of-squares; resident per-n accumulator
    #      across the hw axis, N axis 'parallel' (megacore shards on v7x) ----------
    part_sum, part_ssq = pl.pallas_call(
        _stats_kernel,
        out_shape=(jax.ShapeDtypeStruct((N, C_out, 1), jnp.float32),
                   jax.ShapeDtypeStruct((N, C_out, 1), jnp.float32)),
        grid=(N, num_tiles),
        in_specs=[x_spec, w_spec],
        out_specs=(cvec_out_spec, cvec_out_spec),
        compiler_params=pltpu.CompilerParams(
            dimension_semantics=("parallel", "arbitrary"),
            vmem_limit_bytes=_VMEM_LIMIT),
    )(xs, w_bd)

    # ---- BN finalize (tiny per-channel math): fold into one scale/shift FMA ------
    count = N * HW
    ysum = jnp.sum(part_sum[:, :, 0], axis=0)
    yssq = jnp.sum(part_ssq[:, :, 0], axis=0)
    mean = ysum / count
    var = jnp.maximum(yssq / count - mean * mean, 0.0)   # clamp E[y^2]-E[y]^2 >= 0
    scale = gamma.astype(jnp.float32) * jax.lax.rsqrt(var + EPS)
    shift = beta.astype(jnp.float32) - mean * scale
    scale2 = scale.reshape(C_out, 1)
    shift2 = shift.reshape(C_out, 1)

    # ---- phase 2: recompute y, normalize; writes straight into (N, C_out, HWp) ----
    out = pl.pallas_call(
        _normalize_kernel,
        out_shape=jax.ShapeDtypeStruct((N, C_out, HWp), jnp.float32),
        grid=(N, num_tiles),
        in_specs=[x_spec, w_spec, cvec_in_spec, cvec_in_spec],
        out_specs=pl.BlockSpec((None, C_out, THW), lambda n, j: (n, 0, j)),
        compiler_params=pltpu.CompilerParams(
            dimension_semantics=("parallel", "parallel"),
            vmem_limit_bytes=_VMEM_LIMIT),
    )(xs, w_bd, scale2, shift2)

    if HWp != HW:
        out = out[:, :, :HW]
    return out.reshape(N, C_out, Ho, Wo)


def reference(x, w1, w2, gamma, beta):
    """Pure-JAX reference mirroring the PyTorch forward (training-mode BN)."""
    xr = jnp.maximum(x, 0.0)
    C_half, C_in = w1.shape[0], w1.shape[1]
    Ho, Wo = x.shape[2] // 2, x.shape[3] // 2
    t1 = xr[:, :, 0:2 * Ho:2, 0:2 * Wo:2]
    t2 = xr[:, :, 1:1 + 2 * Ho:2, 1:1 + 2 * Wo:2]
    y1 = jnp.einsum("nchw,oc->nohw", t1, w1.reshape(C_half, C_in))
    y2 = jnp.einsum("nchw,oc->nohw", t2, w2.reshape(C_half, C_in))
    y = jnp.concatenate([y1, y2], axis=1)
    mean = jnp.mean(y, axis=(0, 2, 3), keepdims=True)
    var = jnp.mean((y - mean) ** 2, axis=(0, 2, 3), keepdims=True)
    yhat = (y - mean) / jnp.sqrt(var + EPS)
    return yhat * gamma.reshape(1, -1, 1, 1) + beta.reshape(1, -1, 1, 1)


if __name__ == "__main__":
    # Small shapes consistent with the module: N=2, C_in=4, C_out=8, H=W=16.
    N, C_in, C_out, H, W = 2, 4, 8, 16, 16
    C_half = C_out // 2

    key = jax.random.PRNGKey(0)
    kx, k1, k2, kg, kb = jax.random.split(key, 5)
    x = jax.random.normal(kx, (N, C_in, H, W), dtype=jnp.float32)
    w1 = 0.1 * jax.random.normal(k1, (C_half, C_in, 1, 1), dtype=jnp.float32)
    w2 = 0.1 * jax.random.normal(k2, (C_half, C_in, 1, 1), dtype=jnp.float32)
    gamma = 1.0 + 0.1 * jax.random.normal(kg, (C_out,), dtype=jnp.float32)
    beta = 0.1 * jax.random.normal(kb, (C_out,), dtype=jnp.float32)

    out = jax.block_until_ready(factorized_reduce(x, w1, w2, gamma, beta))
    ref = jax.block_until_ready(reference(x, w1, w2, gamma, beta))

    assert out.shape == (N, C_out, H // 2, W // 2), out.shape
    np.testing.assert_allclose(np.asarray(out), np.asarray(ref), rtol=1e-4, atol=1e-4)
    print("KERNEL_OK")
</pallas_src>

<mosaic_0001>
module attributes {stable_mosaic.version = 11 : i64} {
  func.func @_stats_kernel(%arg0: i32, %arg1: i32, %arg2: memref<1x8x128xf32, #tpu.memory_space<vmem>>, %arg3: memref<8x8xf32, #tpu.memory_space<vmem>>, %arg4: memref<1x8x1xf32, #tpu.memory_space<vmem>>, %arg5: memref<1x8x1xf32, #tpu.memory_space<vmem>>) attributes {dimension_semantics = [#tpu.dimension_semantics<parallel>, #tpu.dimension_semantics<arbitrary>], iteration_bounds = array<i64: 2, 1>, scalar_prefetch = 0 : i64, scratch_operands = 0 : i64, tpu.core_type = #tpu.core_type<tc>, window_params = [{transform_indices = @transform_0, window_bounds = array<i64: 1, 8, 128>}, {pipeline_mode = #tpu.pipeline_mode<synchronous>, transform_indices = @transform_1, window_bounds = array<i64: 8, 8>}, {transform_indices = @transform_2, window_bounds = array<i64: 1, 8, 1>}, {transform_indices = @transform_3, window_bounds = array<i64: 1, 8, 1>}]} {
    %c0_i32 = arith.constant 0 : i32
    %0 = arith.cmpi eq, %arg1, %c0_i32 : i32
    %1 = arith.extui %0 : i1 to i32
    %c0_i32_0 = arith.constant 0 : i32
    %2 = arith.cmpi ne, %1, %c0_i32_0 : i32
    scf.if %2 {
      %cst_19 = arith.constant 0.000000e+00 : f32
      %72 = vector.broadcast %cst_19 : f32 to vector<8x1xf32>
      %c0_20 = arith.constant 0 : index
      %c0_21 = arith.constant 0 : index
      %c0_22 = arith.constant 0 : index
      %73 = vector.load %arg4[%c0_20, %c0_21, %c0_22] : memref<1x8x1xf32, #tpu.memory_space<vmem>>, vector<1x8x1xf32>
      %74 = vector.shape_cast %73 : vector<1x8x1xf32> to vector<8x1xf32>
      %75 = vector.shape_cast %72 : vector<8x1xf32> to vector<1x8x1xf32>
      tpu.vector_store %arg4[%c0_20, %c0_21, %c0_22], %75 {strides = array<i32>} : memref<1x8x1xf32, #tpu.memory_space<vmem>>, vector<1x8x1xf32>,
      %cst_23 = arith.constant 0.000000e+00 : f32
      %76 = vector.broadcast %cst_23 : f32 to vector<8x1xf32>
      %c0_24 = arith.constant 0 : index
      %c0_25 = arith.constant 0 : index
      %c0_26 = arith.constant 0 : index
      %77 = vector.load %arg5[%c0_24, %c0_25, %c0_26] : memref<1x8x1xf32, #tpu.memory_space<vmem>>, vector<1x8x1xf32>
      %78 = vector.shape_cast %77 : vector<1x8x1xf32> to vector<8x1xf32>
      %79 = vector.shape_cast %76 : vector<8x1xf32> to vector<1x8x1xf32>
      tpu.vector_store %arg5[%c0_24, %c0_25, %c0_26], %79 {strides = array<i32>} : memref<1x8x1xf32, #tpu.memory_space<vmem>>, vector<1x8x1xf32>,
    } else {
    }
    %c0 = arith.constant 0 : index
    %c0_1 = arith.constant 0 : index
    %c0_2 = arith.constant 0 : index
    %3 = vector.load %arg2[%c0, %c0_1, %c0_2] : memref<1x8x128xf32, #tpu.memory_space<vmem>>, vector<1x8x128xf32>
    %4 = vector.shape_cast %3 : vector<1x8x128xf32> to vector<8x128xf32>
    %cst = arith.constant 0.000000e+00 : f32
    %5 = vector.broadcast %cst : f32 to vector<8x128xf32>
    %6 = arith.maximumf %4, %5 : vector<8x128xf32>
    %c0_3 = arith.constant 0 : index
    %c0_4 = arith.constant 0 : index
    %7 = vector.load %arg3[%c0_3, %c0_4] : memref<8x8xf32, #tpu.memory_space<vmem>>, vector<8x8xf32>
    %8 = vector.extract_strided_slice %7 {offsets = [0, 0], sizes = [8, 1], strides = [1, 1]} : vector<8x8xf32> to vector<8x1xf32>
    %9 = vector.extract_strided_slice %6 {offsets = [0, 0], sizes = [1, 128], strides = [1, 1]} : vector<8x128xf32> to vector<1x128xf32>
    %10 = vector.broadcast %8 : vector<8x1xf32> to vector<8x128xf32>
    %11 = vector.broadcast %9 : vector<1x128xf32> to vector<8x128xf32>
    %12 = arith.mulf %10, %11 : vector<8x128xf32>
    %13 = vector.extract_strided_slice %7 {offsets = [0, 1], sizes = [8, 1], strides = [1, 1]} : vector<8x8xf32> to vector<8x1xf32>
    %14 = vector.extract_strided_slice %6 {offsets = [1, 0], sizes = [1, 128], strides = [1, 1]} : vector<8x128xf32> to vector<1x128xf32>
    %15 = vector.broadcast %13 : vector<8x1xf32> to vector<8x128xf32>
    %16 = vector.broadcast %14 : vector<1x128xf32> to vector<8x128xf32>
    %17 = arith.mulf %15, %16 : vector<8x128xf32>
    %18 = arith.addf %12, %17 : vector<8x128xf32>
    %19 = vector.extract_strided_slice %7 {offsets = [0, 2], sizes = [8, 1], strides = [1, 1]} : vector<8x8xf32> to vector<8x1xf32>
    %20 = vector.extract_strided_slice %6 {offsets = [2, 0], sizes = [1, 128], strides = [1, 1]} : vector<8x128xf32> to vector<1x128xf32>
    %21 = vector.broadcast %19 : vector<8x1xf32> to vector<8x128xf32>
    %22 = vector.broadcast %20 : vector<1x128xf32> to vector<8x128xf32>
    %23 = arith.mulf %21, %22 : vector<8x128xf32>
    %24 = arith.addf %18, %23 : vector<8x128xf32>
    %25 = vector.extract_strided_slice %7 {offsets = [0, 3], sizes = [8, 1], strides = [1, 1]} : vector<8x8xf32> to vector<8x1xf32>
    %26 = vector.extract_strided_slice %6 {offsets = [3, 0], sizes = [1, 128], strides = [1, 1]} : vector<8x128xf32> to vector<1x128xf32>
    %27 = vector.broadcast %25 : vector<8x1xf32> to vector<8x128xf32>
    %28 = vector.broadcast %26 : vector<1x128xf32> to vector<8x128xf32>
    %29 = arith.mulf %27, %28 : vector<8x128xf32>
    %30 = arith.addf %24, %29 : vector<8x128xf32>
    %31 = vector.extract_strided_slice %7 {offsets = [0, 4], sizes = [8, 1], strides = [1, 1]} : vector<8x8xf32> to vector<8x1xf32>
    %32 = vector.extract_strided_slice %6 {offsets = [4, 0], sizes = [1, 128], strides = [1, 1]} : vector<8x128xf32> to vector<1x128xf32>
    %33 = vector.broadcast %31 : vector<8x1xf32> to vector<8x128xf32>
    %34 = vector.broadcast %32 : vector<1x128xf32> to vector<8x128xf32>
    %35 = arith.mulf %33, %34 : vector<8x128xf32>
    %36 = arith.addf %30, %35 : vector<8x128xf32>
    %37 = vector.extract_strided_slice %7 {offsets = [0, 5], sizes = [8, 1], strides = [1, 1]} : vector<8x8xf32> to vector<8x1xf32>
    %38 = vector.extract_strided_slice %6 {offsets = [5, 0], sizes = [1, 128], strides = [1, 1]} : vector<8x128xf32> to vector<1x128xf32>
    %39 = vector.broadcast %37 : vector<8x1xf32> to vector<8x128xf32>
    %40 = vector.broadcast %38 : vector<1x128xf32> to vector<8x128xf32>
    %41 = arith.mulf %39, %40 : vector<8x128xf32>
    %42 = arith.addf %36, %41 : vector<8x128xf32>
    %43 = vector.extract_strided_slice %7 {offsets = [0, 6], sizes = [8, 1], strides = [1, 1]} : vector<8x8xf32> to vector<8x1xf32>
    %44 = vector.extract_strided_slice %6 {offsets = [6, 0], sizes = [1, 128], strides = [1, 1]} : vector<8x128xf32> to vector<1x128xf32>
    %45 = vector.broadcast %43 : vector<8x1xf32> to vector<8x128xf32>
    %46 = vector.broadcast %44 : vector<1x128xf32> to vector<8x128xf32>
    %47 = arith.mulf %45, %46 : vector<8x128xf32>
    %48 = arith.addf %42, %47 : vector<8x128xf32>
    %49 = vector.extract_strided_slice %7 {offsets = [0, 7], sizes = [8, 1], strides = [1, 1]} : vector<8x8xf32> to vector<8x1xf32>
    %50 = vector.extract_strided_slice %6 {offsets = [7, 0], sizes = [1, 128], strides = [1, 1]} : vector<8x128xf32> to vector<1x128xf32>
    %51 = vector.broadcast %49 : vector<8x1xf32> to vector<8x128xf32>
    %52 = vector.broadcast %50 : vector<1x128xf32> to vector<8x128xf32>
    %53 = arith.mulf %51, %52 : vector<8x128xf32>
    %54 = arith.addf %48, %53 : vector<8x128xf32>
    %c0_5 = arith.constant 0 : index
    %c0_6 = arith.constant 0 : index
    %c0_7 = arith.constant 0 : index
    %55 = vector.load %arg4[%c0_5, %c0_6, %c0_7] : memref<1x8x1xf32, #tpu.memory_space<vmem>>, vector<1x8x1xf32>
    %56 = vector.shape_cast %55 : vector<1x8x1xf32> to vector<8x1xf32>
    %cst_8 = arith.constant dense<0.000000e+00> : vector<8xf32>
    %57 = vector.multi_reduction <add>, %54, %cst_8 [1] : vector<8x128xf32> to vector<8xf32>
    %58 = vector.shape_cast %57 : vector<8xf32> to vector<8x1xf32>
    %59 = arith.addf %56, %58 : vector<8x1xf32>
    %c0_9 = arith.constant 0 : index
    %c0_10 = arith.constant 0 : index
    %c0_11 = arith.constant 0 : index
    %60 = vector.load %arg4[%c0_9, %c0_10, %c0_11] : memref<1x8x1xf32, #tpu.memory_space<vmem>>, vector<1x8x1xf32>
    %61 = vector.shape_cast %60 : vector<1x8x1xf32> to vector<8x1xf32>
    %62 = vector.shape_cast %59 : vector<8x1xf32> to vector<1x8x1xf32>
    tpu.vector_store %arg4[%c0_9, %c0_10, %c0_11], %62 {strides = array<i32>} : memref<1x8x1xf32, #tpu.memory_space<vmem>>, vector<1x8x1xf32>,
    %c0_12 = arith.constant 0 : index
    %c0_13 = arith.constant 0 : index
    %c0_14 = arith.constant 0 : index
    %63 = vector.load %arg5[%c0_12, %c0_13, %c0_14] : memref<1x8x1xf32, #tpu.memory_space<vmem>>, vector<1x8x1xf32>
    %64 = vector.shape_cast %63 : vector<1x8x1xf32> to vector<8x1xf32>
    %65 = arith.mulf %54, %54 : vector<8x128xf32>
    %cst_15 = arith.constant dense<0.000000e+00> : vector<8xf32>
    %66 = vector.multi_reduction <add>, %65, %cst_15 [1] : vector<8x128xf32> to vector<8xf32>
    %67 = vector.shape_cast %66 : vector<8xf32> to vector<8x1xf32>
    %68 = arith.addf %64, %67 : vector<8x1xf32>
    %c0_16 = arith.constant 0 : index
    %c0_17 = arith.constant 0 : index
    %c0_18 = arith.constant 0 : index
    %69 = vector.load %arg5[%c0_16, %c0_17, %c0_18] : memref<1x8x1xf32, #tpu.memory_space<vmem>>, vector<1x8x1xf32>
    %70 = vector.shape_cast %69 : vector<1x8x1xf32> to vector<8x1xf32>
    %71 = vector.shape_cast %68 : vector<8x1xf32> to vector<1x8x1xf32>
    tpu.vector_store %arg5[%c0_16, %c0_17, %c0_18], %71 {strides = array<i32>} : memref<1x8x1xf32, #tpu.memory_space<vmem>>, vector<1x8x1xf32>,
    return
  }
  func.func @transform_0(%arg0: i32, %arg1: i32) -> (i32, i32, i32) {
    %c0_i32 = arith.constant 0 : i32
    %c0_i32_0 = arith.constant 0 : i32
    return %arg0, %c0_i32, %arg1 : i32, i32, i32
  }
  func.func @transform_1(%arg0: i32, %arg1: i32) -> (i32, i32) {
    %c0_i32 = arith.constant 0 : i32
    %c0_i32_0 = arith.constant 0 : i32
    %c0_i32_1 = arith.constant 0 : i32
    return %c0_i32, %c0_i32_0 : i32, i32
  }
  func.func @transform_2(%arg0: i32, %arg1: i32) -> (i32, i32, i32) {
    %c0_i32 = arith.constant 0 : i32
    %c0_i32_0 = arith.constant 0 : i32
    %c0_i32_1 = arith.constant 0 : i32
    return %arg0, %c0_i32, %c0_i32_0 : i32, i32, i32
  }
  func.func @transform_3(%arg0: i32, %arg1: i32) -> (i32, i32, i32) {
    %c0_i32 = arith.constant 0 : i32
    %c0_i32_0 = arith.constant 0 : i32
    %c0_i32_1 = arith.constant 0 : i32
    return %arg0, %c0_i32, %c0_i32_0 : i32, i32, i32
  }
}

</mosaic_0001>

<llo_original>
// kernel: tpu_custom_call.1
$region0: #{tpu_custom_call.1}
  #allocation0 [shape = 'u32[]', space=smem, size = 0x4, offset = 0x4, fixed_abs, tag = 'smem constant byte address 0x4 - core index']
  #allocation1 [shape = 'u32[144,128]{1,0:T(1,128)}', space=vmem, size = 0x12000, scoped, tag = 'internal scratch']
  %s0 = inlined_call_operand.hbm [shape: f32[2,8,128], index: 0, kind: input, shape index: {}]
  %s1 = inlined_call_operand.hbm [shape: f32[8,8], index: 1, kind: input, shape index: {}]
  %s2 = inlined_call_operand.vmem [shape: f32[2,8,1], index: 2, kind: output, shape index: {0}]
  %s3 = inlined_call_operand.vmem [shape: f32[2,8,1], index: 3, kind: output, shape index: {1}]
  %4 = xla_tuple %s2, %s3
  %s5 = sld [smem:[#allocation0]]
  $region61: #{tpu_custom_call.1} parent=0
    _
  %s7 = ssub.s32 1, %s5
  %s8 = scalar_select 0, %s7, %s5
  $region1: #{tpu_custom_call.1} parent=0
    #allocation2 [shape = 'u8[8192]{0}', space=vmem, size = 0x2000, scoped, tag = 'input window, operand 0']
    #allocation3 [shape = 's32[2]{0}', space=sflag, size = 0x8, scoped, tag = 'scoped memory for tpu_custom_call.1']
    #allocation4 [shape = 'u8[4096]{0}', space=vmem, size = 0x1000, scoped, tag = 'input window, operand 1, single buffered']
    #allocation5 [shape = 's32[1]{0}', space=sflag, size = 0x4, scoped, tag = 'scoped memory for tpu_custom_call.1']
    %9 = vsyncpa [#allocation3], 0
    %s10 = scalar_lea.sflag [#allocation3], 1
    %11 = vsyncpa %s10, 0
    %12 = vsyncpa [#allocation5], 0
    loop: start=0, step=1, limit=4
    $region2: #{tpu_custom_call.1} parent=1 // loop_pre_header
      _
    $region3: #{tpu_custom_call.1} parent=1 // loop_header
      %s14 = sphi 0, %s18
      %p15 = scmp.ge.s32.totalorder %s14, 4
      %s21 = sphi 0, %s33
      %s22 = sphi 0, %s29
      %s23 = sphi 0, %s21
      %s24 = sphi 0, %s22
      %s25 = sphi 0, %s23
      %s26 = sphi 0, %s24
      %s38 = sphi 0, %s40
      %s41 = sphi 0, %s38
      %s42 = sphi 0, %s41
      %s58 = sphi 0, %s42
      %s62 = sphi 0, %s62
      %s64 = sphi 0, %s62
      %s65 = sphi 0, %s64
      %s79 = sphi 0, %s65
      %s85 = sphi 0, %s87
      %s88 = sphi 0, %s85
      %s89 = sphi 0, %s88
      %s105 = sphi 0, %s89
      %s111 = sphi 0, %s113
      %s114 = sphi 0, %s111
      %s115 = sphi 0, %s114
      %s131 = sphi 0, %s115
    $region4: #{tpu_custom_call.1} parent=1 // loop_header_branch
      %17 = sbr.rel (%p15) target = $region8
    $region5: #{tpu_custom_call.1} parent=1 // loop_body
      %s19 = ssub.s32 %s14, 1
      %s20 = ssub.s32 %s14, 2
      %s27 = sadd.s32 1, %s22
      %p28 = scmp.ge.s32.totalorder %s27, 1
      %s29 = scalar_select %p28, 0, %s27
      %s30 = sadd.s32 1, %s21
      %s31 = scalar_select %p28, %s30, %s21
      %p32 = scmp.ge.s32.totalorder %s31, 2
      %s33 = scalar_select %p32, 0, %s31
      %s34 = ssub.s32 %s21, %s33
      %s35 = ssub.s32 %s22, %s29
      %s36 = sor.u32 %s34, %s35
      %p37 = scmp.eq.s32.totalorder %s36, 0
      %s39 = sadd.s32 %s38, 1
      %s40 = scalar_select %p37, %s38, %s39
      %p43 = pneg %p37
      %p44 = scmp.eq.s32.totalorder %s14, 1
      %p45 = por %p43, %p44
      %p46 = scmp.ne.s32.totalorder %s38, %s41
      %p47 = scmp.eq.s32.totalorder %s14, 0
      %p48 = por %p46, %p47
      %p49 = scmp.ne.s32.totalorder %s38, %s41
      %p50 = scmp.eq.s32.totalorder %s19, 1
      %p51 = por %p49, %p50
      %p52 = scmp.ne.s32.totalorder %s41, %s42
      %p53 = scmp.eq.s32.totalorder %s19, 0
      %p54 = por %p52, %p53
      %p55 = scmp.ne.s32.totalorder %s41, %s42
      %p56 = scmp.eq.s32.totalorder %s20, 1
      %p57 = por %p55, %p56
      %p59 = scmp.ne.s32.totalorder %s42, %s58
      %p60 = scmp.eq.s32.totalorder %s20, 0
      %p61 = por %p59, %p60
      %s63 = sadd.s32 %s62, 1
      %p66 = scmp.eq.s32.totalorder %s14, 1
      %p67 = scmp.ne.s32.totalorder %s62, %s64
      %p68 = scmp.eq.s32.totalorder %s14, 0
      %p69 = por %p67, %p68
      %p70 = scmp.ne.s32.totalorder %s62, %s64
      %p71 = scmp.eq.s32.totalorder %s19, 1
      %p72 = por %p70, %p71
      %p73 = scmp.ne.s32.totalorder %s64, %s65
      %p74 = scmp.eq.s32.totalorder %s19, 0
      %p75 = por %p73, %p74
      %p76 = scmp.ne.s32.totalorder %s64, %s65
      %p77 = scmp.eq.s32.totalorder %s20, 1
      %p78 = por %p76, %p77
      %p80 = scmp.ne.s32.totalorder %s65, %s79
      %p81 = scmp.eq.s32.totalorder %s20, 0
      %p82 = por %p80, %p81
      %s83 = ssub.s32 %s21, %s33
      %p84 = scmp.eq.s32.totalorder %s83, 0
      %s86 = sadd.s32 %s85, 1
      %s87 = scalar_select %p84, %s85, %s86
      %p90 = pneg %p84
      %p91 = scmp.eq.s32.totalorder %s14, 1
      %p92 = por %p90, %p91
      %p93 = scmp.ne.s32.totalorder %s85, %s88
      %p94 = scmp.eq.s32.totalorder %s14, 0
      %p95 = por %p93, %p94
      %p96 = scmp.ne.s32.totalorder %s85, %s88
      %p97 = scmp.eq.s32.totalorder %s19, 1
      %p98 = por %p96, %p97
      %p99 = scmp.ne.s32.totalorder %s88, %s89
      %p100 = scmp.eq.s32.totalorder %s19, 0
      %p101 = por %p99, %p100
      %p102 = scmp.ne.s32.totalorder %s88, %s89
      %p103 = scmp.eq.s32.totalorder %s20, 1
      %p104 = por %p102, %p103
      %p106 = scmp.ne.s32.totalorder %s89, %s105
      %p107 = scmp.eq.s32.totalorder %s20, 0
      %p108 = por %p106, %p107
      %s109 = ssub.s32 %s21, %s33
      %p110 = scmp.eq.s32.totalorder %s109, 0
      %s112 = sadd.s32 %s111, 1
      %s113 = scalar_select %p110, %s111, %s112
      %p116 = pneg %p110
      %p117 = scmp.eq.s32.totalorder %s14, 1
      %p118 = por %p116, %p117
      %p119 = scmp.ne.s32.totalorder %s111, %s114
      %p120 = scmp.eq.s32.totalorder %s14, 0
      %p121 = por %p119, %p120
      %p122 = scmp.ne.s32.totalorder %s111, %s114
      %p123 = scmp.eq.s32.totalorder %s19, 1
      %p124 = por %p122, %p123
      %p125 = scmp.ne.s32.totalorder %s114, %s115
      %p126 = scmp.eq.s32.totalorder %s19, 0
      %p127 = por %p125, %p126
      %p128 = scmp.ne.s32.totalorder %s114, %s115
      %p129 = scmp.eq.s32.totalorder %s20, 1
      %p130 = por %p128, %p129
      %p132 = scmp.ne.s32.totalorder %s115, %s131
      %p133 = scmp.eq.s32.totalorder %s20, 0
      %p134 = por %p132, %p133
      %p135 = scmp.le.s32.totalorder 1, %s14
      %p136 = scmp.lt.s32.totalorder %s14, 3
      %p137 = pnand %p135, %p136
      %p138 = pneg %p137
      // Predicated region
      $region9: #{tpu_custom_call.1} parent=5 // pred_check
        _
      $region10: #{tpu_custom_call.1} parent=5 // pred_check_branch
        %140 = sbr.rel (%p137) target = $region12
      $region11: #{tpu_custom_call.1} parent=5 // pred_region
        %s141 = ssub.s32 %s14, 1
        // Predicated region
        $region13: #{tpu_custom_call.1} parent=11 // pred_check
          %p142 = pneg %p75
        $region14: #{tpu_custom_call.1} parent=11 // pred_check_branch
          %144 = sbr.rel (%p142) target = $region16
        $region15: #{tpu_custom_call.1} parent=11 // pred_region
          %s146 = ssub.s32 128, 128
          %147 = vsyncadd [#allocation5], %s146
          %s149 = sshll.u32 [#allocation4], 4
          %s150 = int_to_ptr.vmem [resolvable:$true] %s149
          %152 = dma.hbm_to_vmem [thread:$0]  %s1, 128, %s150, [#allocation5]
        $region16: #{tpu_custom_call.1} parent=11 // pred_fallthru
          _
      $region12: #{tpu_custom_call.1} parent=5 // pred_fallthru
        _
      %p153 = scmp.lt.s32.totalorder %s14, 2
      // Predicated region
      $region17: #{tpu_custom_call.1} parent=5 // pred_check
        %p154 = pneg %p153
      $region18: #{tpu_custom_call.1} parent=5 // pred_check_branch
        %156 = sbr.rel (%p154) target = $region20
      $region19: #{tpu_custom_call.1} parent=5 // pred_region
        // Predicated region
        $region21: #{tpu_custom_call.1} parent=19 // pred_check
          %p157 = pneg %p48
        $region22: #{tpu_custom_call.1} parent=19 // pred_check_branch
          %159 = sbr.rel (%p157) target = $region24
        $region23: #{tpu_custom_call.1} parent=19 // pred_region
          %s160 = sand.u32 %s38, 1
          %s161 = scalar_lea.sflag [#allocation3], %s160
          %s162 = sand.u32 %s38, 1
          %s163 = smul.addr %s162, 8
          %s164 = scalar_lea.vmem [#allocation2], %s163
          %s166 = ssub.s32 128, 128
          %167 = vsyncadd %s161, %s166
          %s168 = sadd.s32 %s22, %s21
          %s169 = smul.addr %s168, 128
          %s170 = scalar_lea.hbm %s0, %s169
          %s172 = sshll.u32 %s164, 4
          %s173 = int_to_ptr.vmem [resolvable:$true] %s172
          %175 = dma.hbm_to_vmem [thread:$0]  %s170, 128, %s173, %s161
        $region24: #{tpu_custom_call.1} parent=19 // pred_fallthru
          _
      $region20: #{tpu_custom_call.1} parent=5 // pred_fallthru
        _
      %p176 = scmp.le.s32.totalorder 1, %s14
      %p177 = scmp.lt.s32.totalorder %s14, 3
      %p178 = pnand %p176, %p177
      %p179 = pneg %p178
      // Predicated region
      $region25: #{tpu_custom_call.1} parent=5 // pred_check
        _
      $region26: #{tpu_custom_call.1} parent=5 // pred_check_branch
        %181 = sbr.rel (%p178) target = $region28
      $region27: #{tpu_custom_call.1} parent=5 // pred_region
        %s182 = ssub.s32 %s14, 1
        %s183 = sand.u32 %s41, 1
        %s184 = scalar_lea.sflag [#allocation3], %s183
        %s185 = sand.u32 %s41, 1
        %s186 = smul.addr %s185, 8
        %s187 = scalar_lea.vmem [#allocation2], %s186
        // Predicated region
        $region29: #{tpu_custom_call.1} parent=27 // pred_check
          %p188 = pneg %p54
        $region30: #{tpu_custom_call.1} parent=27 // pred_check_branch
          %190 = sbr.rel (%p188) target = $region32
        $region31: #{tpu_custom_call.1} parent=27 // pred_region
          %191 = dma.done %s184, 128
        $region32: #{tpu_custom_call.1} parent=27 // pred_fallthru
          _
        // Predicated region
        $region33: #{tpu_custom_call.1} parent=27 // pred_check
          %p192 = pneg %p75
        $region34: #{tpu_custom_call.1} parent=27 // pred_check_branch
          %194 = sbr.rel (%p192) target = $region36
        $region35: #{tpu_custom_call.1} parent=27 // pred_region
          %195 = dma.done [#allocation5], 128
        $region36: #{tpu_custom_call.1} parent=27 // pred_fallthru
          _
        %s196 = sand.u32 %s41, 1
        %s197 = scalar_lea.sflag [#allocation3], %s196
        %s198 = sand.u32 %s41, 1
        %s199 = smul.addr %s198, 8
        %s200 = scalar_lea.vmem [#allocation2], %s199
        %p201 = pneg %p54
        %p202 = pneg %p51
        %p203 = pneg %p75
        %p204 = pneg %p72
        %p205 = pneg %p101
        %p206 = pneg %p98
        %p207 = scmp.lt.s32.totalorder %s23, 1
        %s208 = scalar_select %p207, %s23, 1
        %s209 = smul.addr %s208, 8
        %s210 = scalar_lea.vmem %s2, %s209
        %p211 = pneg %p127
        %p212 = pneg %p124
        %p213 = scmp.lt.s32.totalorder %s23, 1
        %s214 = scalar_select %p213, %s23, 1
        %s215 = smul.addr %s214, 8
        %s216 = scalar_lea.vmem %s3, %s215
        %p217 = scmp.lt.s32.totalorder %s23, 1
        %s218 = scalar_select %p217, %s23, 1
        %s219 = smul.addr %s218, 8
        %s220 = scalar_lea.vmem %s2, %s219
        %p221 = scmp.lt.s32.totalorder %s23, 1
        %s222 = scalar_select %p221, %s23, 1
        %s223 = smul.addr %s222, 8
        %s224 = scalar_lea.vmem %s3, %s223
        %p225 = scmp.eq.s32.totalorder %s24, 0
        // Predicated region
        $region37: #{tpu_custom_call.1} parent=27 // pred_check
          %p226 = pneg %p225
        $region38: #{tpu_custom_call.1} parent=27 // pred_check_branch
          %228 = sbr.rel (%p226) target = $region40
        $region39: #{tpu_custom_call.1} parent=27 // pred_region
          %vm229 = vcmask 7168
          %230 = vst.msk [vmem:[%s220] sm:$0xff] %vm229, 0.0
          %231 = vst.msk [vmem:[%s224] sm:$0xff] %vm229, 0.0
        $region40: #{tpu_custom_call.1} parent=27 // pred_fallthru
          _
        %v232 = vld [vmem:[%s187] sm:$0xff]
        %v233 = vmax.f32 %v232, 0.0
        %v234 = vld [vmem:[#allocation4] sm:$0xff]
        %236 = vset.pattern.permute.xlu0 0
        %237 = vperm.xlu0 %236, %v234
        %v238 = vpop.permute.xlu0 %237
        %v240 = vlaneseq
        %v241 = vshrl.u32 %v240, 7
        %v242 = vsub.s32 0, %v241
        %v243 = vrot.slane %v233, %v242
        %v244 = vmul.f32 %v238, %v243
        %245 = vset.pattern.permute.xlu0 1
        %246 = vperm.xlu0 %245, %v234
        %v247 = vpop.permute.xlu0 %246
        %v249 = vlaneseq
        %v250 = vshrl.u32 %v249, 7
        %v251 = vsub.s32 1, %v250
        %v252 = vrot.slane %v233, %v251
        %v253 = vmul.f32 %v247, %v252
        %v254 = vadd.f32 %v244, %v253
        %255 = vset.pattern.permute.xlu0 2
        %256 = vperm.xlu0 %255, %v234
        %v257 = vpop.permute.xlu0 %256
        %v259 = vlaneseq
        %v260 = vshrl.u32 %v259, 7
        %v261 = vsub.s32 2, %v260
        %v262 = vrot.slane %v233, %v261
        %v263 = vmul.f32 %v257, %v262
        %v264 = vadd.f32 %v254, %v263
        %265 = vset.pattern.permute.xlu0 3
        %266 = vperm.xlu0 %265, %v234
        %v267 = vpop.permute.xlu0 %266
        %v269 = vlaneseq
        %v270 = vshrl.u32 %v269, 7
        %v271 = vsub.s32 3, %v270
        %v272 = vrot.slane %v233, %v271
        %v273 = vmul.f32 %v267, %v272
        %v274 = vadd.f32 %v264, %v273
        %275 = vset.pattern.permute.xlu0 4
        %276 = vperm.xlu0 %275, %v234
        %v277 = vpop.permute.xlu0 %276
        %v279 = vlaneseq
        %v280 = vshrl.u32 %v279, 7
        %v281 = vsub.s32 4, %v280
        %v282 = vrot.slane %v233, %v281
        %v283 = vmul.f32 %v277, %v282
        %v284 = vadd.f32 %v274, %v283
        %285 = vset.pattern.permute.xlu0 5
        %286 = vperm.xlu0 %285, %v234
        %v287 = vpop.permute.xlu0 %286
        %v289 = vlaneseq
        %v290 = vshrl.u32 %v289, 7
        %v291 = vsub.s32 5, %v290
        %v292 = vrot.slane %v233, %v291
        %v293 = vmul.f32 %v287, %v292
        %v294 = vadd.f32 %v284, %v293
        %295 = vset.pattern.permute.xlu0 6
        %296 = vperm.xlu0 %295, %v234
        %v297 = vpop.permute.xlu0 %296
        %v299 = vlaneseq
        %v300 = vshrl.u32 %v299, 7
        %v301 = vsub.s32 6, %v300
        %v302 = vrot.slane %v233, %v301
        %v303 = vmul.f32 %v297, %v302
        %v304 = vadd.f32 %v294, %v303
        %305 = vset.pattern.permute.xlu0 7
        %306 = vperm.xlu0 %305, %v234
        %v307 = vpop.permute.xlu0 %306
        %v309 = vlaneseq
        %v310 = vshrl.u32 %v309, 7
        %v311 = vsub.s32 7, %v310
        %v312 = vrot.slane %v233, %v311
        %v313 = vmul.f32 %v307, %v312
        %v314 = vadd.f32 %v304, %v313
        %v315 = vld [vmem:[%s220] sm:$0xff]
        %316 = vadd.xlane.f32.xlu0 %v314
        %v317 = vpop.xlane.xlu0 %316
        %v318 = vadd.f32 %v315, %v317
        %vm319 = vcmask 7168
        %320 = vst.msk [vmem:[%s220] sm:$0xff] %vm319, %v318
        %v321 = vld [vmem:[%s224] sm:$0xff]
        %v322 = vmul.f32 %v314, %v314
        %323 = vadd.xlane.f32.xlu0 %v322
        %v324 = vpop.xlane.xlu0 %323
        %v325 = vadd.f32 %v321, %v324
        %326 = vst.msk [vmem:[%s224] sm:$0xff] %vm319, %v325
        %p327 = scmp.lt.s32.totalorder %s23, 1
        %s328 = scalar_select %p327, %s23, 1
        %s329 = smul.addr %s328, 8
        %s330 = scalar_lea.vmem %s2, %s329
        %p331 = scmp.lt.s32.totalorder %s23, 1
        %s332 = scalar_select %p331, %s23, 1
        %s333 = smul.addr %s332, 8
        %s334 = scalar_lea.vmem %s3, %s333
        // Predicated region
        $region41: #{tpu_custom_call.1} parent=27 // pred_check
          %p335 = pneg %p98
        $region42: #{tpu_custom_call.1} parent=27 // pred_check_branch
          %337 = sbr.rel (%p335) target = $region44
        $region43: #{tpu_custom_call.1} parent=27 // pred_region
          _
        $region44: #{tpu_custom_call.1} parent=27 // pred_fallthru
          _
        // Predicated region
        $region45: #{tpu_custom_call.1} parent=27 // pred_check
          %p338 = pneg %p124
        $region46: #{tpu_custom_call.1} parent=27 // pred_check_branch
          %340 = sbr.rel (%p338) target = $region48
        $region47: #{tpu_custom_call.1} parent=27 // pred_region
          _
        $region48: #{tpu_custom_call.1} parent=27 // pred_fallthru
          _
      $region28: #{tpu_custom_call.1} parent=5 // pred_fallthru
        _
      %p341 = scmp.le.s32.totalorder 2, %s14
      // Predicated region
      $region49: #{tpu_custom_call.1} parent=5 // pred_check
        %p342 = pneg %p341
      $region50: #{tpu_custom_call.1} parent=5 // pred_check_branch
        %344 = sbr.rel (%p342) target = $region52
      $region51: #{tpu_custom_call.1} parent=5 // pred_region
        %s345 = ssub.s32 %s14, 2
        // Predicated region
        $region53: #{tpu_custom_call.1} parent=51 // pred_check
          %p346 = pneg %p104
        $region54: #{tpu_custom_call.1} parent=51 // pred_check_branch
          %348 = sbr.rel (%p346) target = $region56
        $region55: #{tpu_custom_call.1} parent=51 // pred_region
          %p349 = scmp.lt.s32.totalorder %s25, 1
          %s350 = scalar_select %p349, %s25, 1
          %s351 = smul.addr %s350, 8
          %s352 = scalar_lea.vmem %s2, %s351
        $region56: #{tpu_custom_call.1} parent=51 // pred_fallthru
          _
        // Predicated region
        $region57: #{tpu_custom_call.1} parent=51 // pred_check
          %p353 = pneg %p130
        $region58: #{tpu_custom_call.1} parent=51 // pred_check_branch
          %355 = sbr.rel (%p353) target = $region60
        $region59: #{tpu_custom_call.1} parent=51 // pred_region
          %p356 = scmp.lt.s32.totalorder %s25, 1
          %s357 = scalar_select %p356, %s25, 1
          %s358 = smul.addr %s357, 8
          %s359 = scalar_lea.vmem %s3, %s358
        $region60: #{tpu_custom_call.1} parent=51 // pred_fallthru
          _
      $region52: #{tpu_custom_call.1} parent=5 // pred_fallthru
        _
    $region6: #{tpu_custom_call.1} parent=1 // loop_footer
      %s18 = sadd.s32 1, %s14
    $region7: #{tpu_custom_call.1} parent=1 // loop_footer_branch
      %13 = sbr.rel target = $region3
    $region8: #{tpu_custom_call.1} parent=1 // loop_exit
      _
    %360 = vsyncpa [#allocation3], 1
    %s361 = scalar_lea.sflag [#allocation3], 1
    %362 = vsyncpa %s361, 1
    %363 = vsyncpa [#allocation5], 1

</llo_original>
